<compile_context>
chip_gen: v7x
topology: tpu7x:2x2x1
jax: 0.10.0
libtpu: 0.0.40
codegen_flags: <defaults>
</compile_context>

<pallas_src>
import jax
import jax.numpy as jnp
from jax.experimental import pallas as pl
from jax.experimental.pallas import tpu as pltpu  # noqa: F401  (TPU backend)


# ----------------------------- problem sizes -------------------------------
B = 2            # batch size
O = 4            # number of objects
F = 8            # features per object
G = 128          # number of ground atoms (lane-aligned)
C = 8            # number of clauses
T = 4            # forward-chaining inference steps
N_ACT = 4        # number of action predicates (prednames)
GAMMA = 0.01     # softor temperature (NSFR default)
INV_GAMMA = 1.0 / GAMMA

P_ROWS = G + O * F + 1   # packed-parameter rows: [M_w | W_fc | b_fc]

# deterministic "atom indices" of the action predicates inside the atom list
ACTION_INDICES = (5, 17, 42, 99)


# ------------------------------ fused kernel ---------------------------------
def nsfr_kernel(x_ref, p_ref, vt_ref):
    """Fused FactsConverter + InferModule.

    V_0     = sigmoid(x_flat @ W_fc + b_fc)
    V_{t+1} = softor(V_t, clip(V_t @ M_w, 0, 1)),  t = 0..T-1  (unrolled)
    softor(a, b) = clip(max(a,b) + GAMMA * log1p(exp(-|a-b| / GAMMA)), 0, 1)

    Packed params p_ref (bf16): rows [0, G) = M_w, rows [G, G+O*F) = W_fc,
    row G+O*F = b_fc.  MXU operands are bf16; elementwise math is f32.
    """
    m_w = p_ref[0:G, :]                                   # (G, G)   bf16
    w_fc = p_ref[G:G + O * F, :]                          # (O*F, G) bf16
    b_fc = p_ref[G + O * F:G + O * F + 1, :].astype(jnp.float32)  # (1, G) f32

    # --- FactsConverter ---
    x_bf = x_ref[...].astype(jnp.bfloat16)                # (B, O*F)
    logits = jnp.dot(x_bf, w_fc, preferred_element_type=jnp.float32)
    v = jax.nn.sigmoid(logits + b_fc)                     # (B, G) f32

    # --- InferModule: T unrolled forward-chaining steps ---
    for _ in range(T):
        r = jnp.dot(v.astype(jnp.bfloat16), m_w,
                    preferred_element_type=jnp.float32)
        r = jnp.clip(r, 0.0, 1.0)
        mx = jnp.maximum(v, r)
        so = mx + GAMMA * jnp.log1p(jnp.exp(-jnp.abs(v - r) * INV_GAMMA))
        v = jnp.clip(so, 0.0, 1.0)

    vt_ref[...] = v


# ------------------------------ wrapper --------------------------------------
_COST = pl.CostEstimate(
    flops=2 * (B * (O * F) * G + T * B * G * G),
    transcendentals=B * G * (2 + 2 * T),
    bytes_accessed=B * O * F * 4 + P_ROWS * G * 2 + B * G * 4,
)


@jax.jit
def nsfr_forward(x, params):
    """Full NSFReasoner.forward: x -> (V_T [B, G], actions [B, N_ACT])."""
    x_flat = x.reshape(B, O * F).astype(jnp.float32)      # metadata-only reshape

    v_t = pl.pallas_call(
        nsfr_kernel,
        out_shape=jax.ShapeDtypeStruct((B, G), jnp.float32),
        in_specs=[
            pl.BlockSpec((B, O * F), lambda: (0, 0)),
            pl.BlockSpec((P_ROWS, G), lambda: (0, 0)),
        ],
        out_specs=pl.BlockSpec((B, G), lambda: (0, 0)),
        cost_estimate=_COST,
    )(x_flat, params)

    # action extraction: static column gather in the wrapper (lane-dense kernel
    # output, no masked stores, no one-hot matmul)
    actions = v_t[:, jnp.array(ACTION_INDICES)]
    return v_t, actions


def build_params(key):
    """Deterministic synthetic parameters (the module __init__ owns no weights;
    fc / im parameters are synthesized here).  Returns the packed bf16 blob used
    by the kernel plus the raw f32 pieces for the reference check."""
    k1, k2, k3, k4 = jax.random.split(key, 4)

    # FactsConverter: linear valuation map
    w_fc = jax.random.normal(k1, (O * F, G), dtype=jnp.float32) * 0.3
    b_fc = jax.random.normal(k2, (1, G), dtype=jnp.float32) * 0.1

    # InferModule: C clause implication matrices + clause weights W [C]
    clause_mats = jax.nn.softmax(
        jax.random.normal(k3, (C, G, G), dtype=jnp.float32), axis=1
    )
    w_im = jax.random.normal(k4, (C,), dtype=jnp.float32)
    # clause-weighted implication matrix (parameter setup, plain JAX)
    m_w = jnp.einsum("c,cgh->gh", jax.nn.softmax(w_im), clause_mats)

    # pack [M_w | W_fc | b_fc] along rows; all starts sublane-aligned (0/128/160)
    params = jnp.concatenate([m_w, w_fc, b_fc], axis=0).astype(jnp.bfloat16)
    assert params.shape == (P_ROWS, G)
    return params, (w_fc, b_fc, m_w)


def _reference_forward(x, w_fc, b_fc, m_w):
    """Plain-JAX reference replicating the kernel's bf16 MXU operand casts."""
    x_flat = x.reshape(B, O * F)
    w_bf = w_fc.astype(jnp.bfloat16)
    b_f32 = b_fc.astype(jnp.bfloat16).astype(jnp.float32)
    m_bf = m_w.astype(jnp.bfloat16)
    v = jax.nn.sigmoid(
        jnp.dot(x_flat.astype(jnp.bfloat16), w_bf,
                preferred_element_type=jnp.float32) + b_f32)
    for _ in range(T):
        r = jnp.clip(
            jnp.dot(v.astype(jnp.bfloat16), m_bf,
                    preferred_element_type=jnp.float32), 0.0, 1.0)
        mx = jnp.maximum(v, r)
        v = jnp.clip(
            mx + GAMMA * jnp.log1p(jnp.exp(-jnp.abs(v - r) * INV_GAMMA)), 0.0, 1.0)
    return v


# TODO(synk): atom/clause symbolic bookkeeping (get_prednames, print_* helpers,
# explain-mode dummy-zero gradient retention) has no tensor compute and is not
# translated.

if __name__ == "__main__":
    key = jax.random.PRNGKey(0)
    k_x, k_p = jax.random.split(key)

    # game state: [batch, num_objects, features]
    x = jax.random.uniform(k_x, (B, O, F), dtype=jnp.float32)
    params, (w_fc, b_fc, m_w) = build_params(k_p)

    v_t, actions = nsfr_forward(x, params)
    jax.block_until_ready((v_t, actions))

    assert v_t.shape == (B, G)
    assert actions.shape == (B, N_ACT)
    assert bool(jnp.all(jnp.isfinite(v_t)))
    assert bool(jnp.all(jnp.isfinite(actions)))
    # actions must be exactly the selected V_T columns
    ref_actions = v_t[:, jnp.array(ACTION_INDICES)]
    assert bool(jnp.allclose(actions, ref_actions, atol=1e-6))
    # valuations must be probabilities
    assert bool(jnp.all((v_t >= 0.0) & (v_t <= 1.0)))

    # reference check of the full fused pipeline in plain JAX (same bf16 casts;
    # tolerance relaxed to 1e-3 per bf16-MXU-operand change)
    v_ref = _reference_forward(x, w_fc, b_fc, m_w)
    assert bool(jnp.allclose(v_t, v_ref, atol=1e-3)), (
        float(jnp.max(jnp.abs(v_t - v_ref))))

    print("KERNEL_OK")
</pallas_src>

<mosaic_0001>
module attributes {stable_mosaic.version = 11 : i64} {
  func.func @nsfr_kernel(%arg0: memref<2x32xf32, #tpu.memory_space<vmem>>, %arg1: memref<161x128xbf16, #tpu.memory_space<vmem>>, %arg2: memref<2x128xf32, #tpu.memory_space<vmem>>) attributes {dimension_semantics = [], scalar_prefetch = 0 : i64, scratch_operands = 0 : i64, tpu.core_type = #tpu.core_type<tc>} {
    %c0 = arith.constant 0 : index
    %c0_0 = arith.constant 0 : index
    %0 = vector.load %arg1[%c0, %c0_0] : memref<161x128xbf16, #tpu.memory_space<vmem>>, vector<128x128xbf16>
    %c128 = arith.constant 128 : index
    %c0_1 = arith.constant 0 : index
    %1 = vector.load %arg1[%c128, %c0_1] : memref<161x128xbf16, #tpu.memory_space<vmem>>, vector<32x128xbf16>
    %c160 = arith.constant 160 : index
    %c0_2 = arith.constant 0 : index
    %2 = vector.load %arg1[%c160, %c0_2] : memref<161x128xbf16, #tpu.memory_space<vmem>>, vector<1x128xbf16>
    %3 = arith.extf %2 : vector<1x128xbf16> to vector<1x128xf32>
    %c0_3 = arith.constant 0 : index
    %c0_4 = arith.constant 0 : index
    %4 = vector.load %arg0[%c0_3, %c0_4] : memref<2x32xf32, #tpu.memory_space<vmem>>, vector<2x32xf32>
    %5 = arith.truncf %4 : vector<2x32xf32> to vector<2x32xbf16>
    %cst = arith.constant dense<0.000000e+00> : vector<2x128xf32>
    %6 = tpu.matmul %5, %1, %cst {dimension_numbers = #tpu.dot_dimension_numbers<[1], [0], [0], [1], [0, 0, 1, 1], [], []>} : vector<2x32xbf16>, vector<32x128xbf16>, vector<2x128xf32> -> vector<2x128xf32>
    %7 = vector.broadcast %3 : vector<1x128xf32> to vector<2x128xf32>
    %8 = arith.addf %6, %7 : vector<2x128xf32>
    %9 = arith.negf %8 : vector<2x128xf32>
    %10 = math.exp %9 : vector<2x128xf32>
    %cst_5 = arith.constant 1.000000e+00 : f32
    %11 = vector.broadcast %cst_5 : f32 to vector<2x128xf32>
    %12 = arith.addf %11, %10 : vector<2x128xf32>
    %13 = arith.divf %11, %12 : vector<2x128xf32>
    %14 = arith.truncf %13 : vector<2x128xf32> to vector<2x128xbf16>
    %cst_6 = arith.constant dense<0.000000e+00> : vector<2x128xf32>
    %15 = tpu.matmul %14, %0, %cst_6 {dimension_numbers = #tpu.dot_dimension_numbers<[1], [0], [0], [1], [0, 0, 1, 1], [], []>} : vector<2x128xbf16>, vector<128x128xbf16>, vector<2x128xf32> -> vector<2x128xf32>
    %cst_7 = arith.constant 0.000000e+00 : f32
    %cst_8 = arith.constant 1.000000e+00 : f32
    %16 = vector.broadcast %cst_7 : f32 to vector<2x128xf32>
    %17 = arith.maximumf %16, %15 : vector<2x128xf32>
    %18 = vector.broadcast %cst_8 : f32 to vector<2x128xf32>
    %19 = arith.minimumf %18, %17 : vector<2x128xf32>
    %20 = arith.maximumf %13, %19 : vector<2x128xf32>
    %21 = arith.subf %13, %19 : vector<2x128xf32>
    %22 = math.absf %21 : vector<2x128xf32>
    %cst_9 = arith.constant 0.000000e+00 : f32
    %23 = vector.broadcast %cst_9 : f32 to vector<2x128xf32>
    %24 = arith.subf %23, %22 : vector<2x128xf32>
    %cst_10 = arith.constant 1.000000e+02 : f32
    %25 = vector.broadcast %cst_10 : f32 to vector<2x128xf32>
    %26 = arith.mulf %24, %25 : vector<2x128xf32>
    %27 = math.exp %26 : vector<2x128xf32>
    %28 = math.log1p %27 : vector<2x128xf32>
    %cst_11 = arith.constant 0.00999999977 : f32
    %29 = vector.broadcast %cst_11 : f32 to vector<2x128xf32>
    %30 = arith.mulf %29, %28 : vector<2x128xf32>
    %31 = arith.addf %20, %30 : vector<2x128xf32>
    %cst_12 = arith.constant 0.000000e+00 : f32
    %cst_13 = arith.constant 1.000000e+00 : f32
    %32 = vector.broadcast %cst_12 : f32 to vector<2x128xf32>
    %33 = arith.maximumf %32, %31 : vector<2x128xf32>
    %34 = vector.broadcast %cst_13 : f32 to vector<2x128xf32>
    %35 = arith.minimumf %34, %33 : vector<2x128xf32>
    %36 = arith.truncf %35 : vector<2x128xf32> to vector<2x128xbf16>
    %cst_14 = arith.constant dense<0.000000e+00> : vector<2x128xf32>
    %37 = tpu.matmul %36, %0, %cst_14 {dimension_numbers = #tpu.dot_dimension_numbers<[1], [0], [0], [1], [0, 0, 1, 1], [], []>} : vector<2x128xbf16>, vector<128x128xbf16>, vector<2x128xf32> -> vector<2x128xf32>
    %cst_15 = arith.constant 0.000000e+00 : f32
    %cst_16 = arith.constant 1.000000e+00 : f32
    %38 = vector.broadcast %cst_15 : f32 to vector<2x128xf32>
    %39 = arith.maximumf %38, %37 : vector<2x128xf32>
    %40 = vector.broadcast %cst_16 : f32 to vector<2x128xf32>
    %41 = arith.minimumf %40, %39 : vector<2x128xf32>
    %42 = arith.maximumf %35, %41 : vector<2x128xf32>
    %43 = arith.subf %35, %41 : vector<2x128xf32>
    %44 = math.absf %43 : vector<2x128xf32>
    %cst_17 = arith.constant 0.000000e+00 : f32
    %45 = vector.broadcast %cst_17 : f32 to vector<2x128xf32>
    %46 = arith.subf %45, %44 : vector<2x128xf32>
    %cst_18 = arith.constant 1.000000e+02 : f32
    %47 = vector.broadcast %cst_18 : f32 to vector<2x128xf32>
    %48 = arith.mulf %46, %47 : vector<2x128xf32>
    %49 = math.exp %48 : vector<2x128xf32>
    %50 = math.log1p %49 : vector<2x128xf32>
    %cst_19 = arith.constant 0.00999999977 : f32
    %51 = vector.broadcast %cst_19 : f32 to vector<2x128xf32>
    %52 = arith.mulf %51, %50 : vector<2x128xf32>
    %53 = arith.addf %42, %52 : vector<2x128xf32>
    %cst_20 = arith.constant 0.000000e+00 : f32
    %cst_21 = arith.constant 1.000000e+00 : f32
    %54 = vector.broadcast %cst_20 : f32 to vector<2x128xf32>
    %55 = arith.maximumf %54, %53 : vector<2x128xf32>
    %56 = vector.broadcast %cst_21 : f32 to vector<2x128xf32>
    %57 = arith.minimumf %56, %55 : vector<2x128xf32>
    %58 = arith.truncf %57 : vector<2x128xf32> to vector<2x128xbf16>
    %cst_22 = arith.constant dense<0.000000e+00> : vector<2x128xf32>
    %59 = tpu.matmul %58, %0, %cst_22 {dimension_numbers = #tpu.dot_dimension_numbers<[1], [0], [0], [1], [0, 0, 1, 1], [], []>} : vector<2x128xbf16>, vector<128x128xbf16>, vector<2x128xf32> -> vector<2x128xf32>
    %cst_23 = arith.constant 0.000000e+00 : f32
    %cst_24 = arith.constant 1.000000e+00 : f32
    %60 = vector.broadcast %cst_23 : f32 to vector<2x128xf32>
    %61 = arith.maximumf %60, %59 : vector<2x128xf32>
    %62 = vector.broadcast %cst_24 : f32 to vector<2x128xf32>
    %63 = arith.minimumf %62, %61 : vector<2x128xf32>
    %64 = arith.maximumf %57, %63 : vector<2x128xf32>
    %65 = arith.subf %57, %63 : vector<2x128xf32>
    %66 = math.absf %65 : vector<2x128xf32>
    %cst_25 = arith.constant 0.000000e+00 : f32
    %67 = vector.broadcast %cst_25 : f32 to vector<2x128xf32>
    %68 = arith.subf %67, %66 : vector<2x128xf32>
    %cst_26 = arith.constant 1.000000e+02 : f32
    %69 = vector.broadcast %cst_26 : f32 to vector<2x128xf32>
    %70 = arith.mulf %68, %69 : vector<2x128xf32>
    %71 = math.exp %70 : vector<2x128xf32>
    %72 = math.log1p %71 : vector<2x128xf32>
    %cst_27 = arith.constant 0.00999999977 : f32
    %73 = vector.broadcast %cst_27 : f32 to vector<2x128xf32>
    %74 = arith.mulf %73, %72 : vector<2x128xf32>
    %75 = arith.addf %64, %74 : vector<2x128xf32>
    %cst_28 = arith.constant 0.000000e+00 : f32
    %cst_29 = arith.constant 1.000000e+00 : f32
    %76 = vector.broadcast %cst_28 : f32 to vector<2x128xf32>
    %77 = arith.maximumf %76, %75 : vector<2x128xf32>
    %78 = vector.broadcast %cst_29 : f32 to vector<2x128xf32>
    %79 = arith.minimumf %78, %77 : vector<2x128xf32>
    %80 = arith.truncf %79 : vector<2x128xf32> to vector<2x128xbf16>
    %cst_30 = arith.constant dense<0.000000e+00> : vector<2x128xf32>
    %81 = tpu.matmul %80, %0, %cst_30 {dimension_numbers = #tpu.dot_dimension_numbers<[1], [0], [0], [1], [0, 0, 1, 1], [], []>} : vector<2x128xbf16>, vector<128x128xbf16>, vector<2x128xf32> -> vector<2x128xf32>
    %cst_31 = arith.constant 0.000000e+00 : f32
    %cst_32 = arith.constant 1.000000e+00 : f32
    %82 = vector.broadcast %cst_31 : f32 to vector<2x128xf32>
    %83 = arith.maximumf %82, %81 : vector<2x128xf32>
    %84 = vector.broadcast %cst_32 : f32 to vector<2x128xf32>
    %85 = arith.minimumf %84, %83 : vector<2x128xf32>
    %86 = arith.maximumf %79, %85 : vector<2x128xf32>
    %87 = arith.subf %79, %85 : vector<2x128xf32>
    %88 = math.absf %87 : vector<2x128xf32>
    %cst_33 = arith.constant 0.000000e+00 : f32
    %89 = vector.broadcast %cst_33 : f32 to vector<2x128xf32>
    %90 = arith.subf %89, %88 : vector<2x128xf32>
    %cst_34 = arith.constant 1.000000e+02 : f32
    %91 = vector.broadcast %cst_34 : f32 to vector<2x128xf32>
    %92 = arith.mulf %90, %91 : vector<2x128xf32>
    %93 = math.exp %92 : vector<2x128xf32>
    %94 = math.log1p %93 : vector<2x128xf32>
    %cst_35 = arith.constant 0.00999999977 : f32
    %95 = vector.broadcast %cst_35 : f32 to vector<2x128xf32>
    %96 = arith.mulf %95, %94 : vector<2x128xf32>
    %97 = arith.addf %86, %96 : vector<2x128xf32>
    %cst_36 = arith.constant 0.000000e+00 : f32
    %cst_37 = arith.constant 1.000000e+00 : f32
    %98 = vector.broadcast %cst_36 : f32 to vector<2x128xf32>
    %99 = arith.maximumf %98, %97 : vector<2x128xf32>
    %100 = vector.broadcast %cst_37 : f32 to vector<2x128xf32>
    %101 = arith.minimumf %100, %99 : vector<2x128xf32>
    %c0_38 = arith.constant 0 : index
    %c0_39 = arith.constant 0 : index
    %102 = vector.load %arg2[%c0_38, %c0_39] : memref<2x128xf32, #tpu.memory_space<vmem>>, vector<2x128xf32>
    tpu.vector_store %arg2[%c0_38, %c0_39], %101 {strides = array<i32>} : memref<2x128xf32, #tpu.memory_space<vmem>>, vector<2x128xf32>,
    return
  }
}

</mosaic_0001>

<llo_original>
// kernel: nsfr_forward.1
$region0: #{nsfr_forward.1}
  #allocation0 [shape = 'u32[]', space=smem, size = 0x4, offset = 0x4, fixed_abs, tag = 'smem constant byte address 0x4 - core index']
  #allocation1 [shape = 'u32[144,128]{1,0:T(1,128)}', space=vmem, size = 0x12000, scoped, tag = 'internal scratch']
  %s0 = inlined_call_operand.vmem [shape: f32[2,32], index: 0, kind: input, shape index: {}]
  %s1 = inlined_call_operand.hbm [shape: bf16[161,128], index: 1, kind: input, shape index: {}]
  %s2 = inlined_call_operand.vmem [shape: f32[2,128], index: 2, kind: output, shape index: {}]
  %s3 = sld [smem:[#allocation0]]
  $region22: #{nsfr_forward.1} parent=0
    _
  %s5 = ssub.s32 1, %s3
  %s6 = scalar_select 0, %s5, %s3
  $region1: #{nsfr_forward.1} parent=0
    #allocation2 [shape = 'u8[43008]{0}', space=vmem, size = 0xa800, scoped, tag = 'input window, operand 1, single buffered']
    #allocation3 [shape = 's32[1]{0}', space=sflag, size = 0x4, scoped, tag = 'scoped memory for nsfr_forward.1']
    %7 = vsyncpa [#allocation3], 0
    // Predicated region
    $region2: #{nsfr_forward.1} parent=1 // pred_check
      _
    $region3: #{nsfr_forward.1} parent=1 // pred_check_branch
      %9 = sbr.rel (0) target = $region5
    $region4: #{nsfr_forward.1} parent=1 // pred_region
      _
    $region5: #{nsfr_forward.1} parent=1 // pred_fallthru
      _
    // Predicated region
    $region6: #{nsfr_forward.1} parent=1 // pred_check
      _
    $region7: #{nsfr_forward.1} parent=1 // pred_check_branch
      %11 = sbr.rel (0) target = $region9
    $region8: #{nsfr_forward.1} parent=1 // pred_region
      %s13 = ssub.s32 1344, 1344
      %14 = vsyncadd [#allocation3], %s13
      %s15 = sshll.u32 [#allocation2], 4
      %s16 = int_to_ptr.vmem [resolvable:$true] %s15
      %21 = dma.hbm_to_vmem [thread:$0]  %s1, 1344, %s16, [#allocation3], 64, 64, 4
    $region9: #{nsfr_forward.1} parent=1 // pred_fallthru
      _
    // Predicated region
    $region10: #{nsfr_forward.1} parent=1 // pred_check
      _
    $region11: #{nsfr_forward.1} parent=1 // pred_check_branch
      %23 = sbr.rel (0) target = $region13
    $region12: #{nsfr_forward.1} parent=1 // pred_region
      %24 = dma.done [#allocation3], 1344
    $region13: #{nsfr_forward.1} parent=1 // pred_fallthru
      _
    %v26 = vld [vmem:[#allocation2] sm:$0xf]
    %v27 = vld [vmem:[#allocation2 + $0x4] sm:$0xf]
    %v28 = vld [vmem:[#allocation2 + $0x8] sm:$0xf]
    %v29 = vld [vmem:[#allocation2 + $0xc] sm:$0xf]
    %v30 = vld [vmem:[#allocation2 + $0x10] sm:$0xf]
    %v31 = vld [vmem:[#allocation2 + $0x14] sm:$0xf]
    %v32 = vld [vmem:[#allocation2 + $0x18] sm:$0xf]
    %v33 = vld [vmem:[#allocation2 + $0x1c] sm:$0xf]
    %v34 = vld [vmem:[#allocation2 + $0x20] sm:$0xf]
    %v35 = vld [vmem:[#allocation2 + $0x24] sm:$0xf]
    %v36 = vld [vmem:[#allocation2 + $0x28] sm:$0xf]
    %v37 = vld [vmem:[#allocation2 + $0x2c] sm:$0xf]
    %v38 = vld [vmem:[#allocation2 + $0x30] sm:$0xf]
    %v39 = vld [vmem:[#allocation2 + $0x34] sm:$0xf]
    %v40 = vld [vmem:[#allocation2 + $0x38] sm:$0xf]
    %v41 = vld [vmem:[#allocation2 + $0x3c] sm:$0xf]
    %v42 = vld [vmem:[#allocation2 + $0x40] sm:$0xf]
    %v43 = vld [vmem:[#allocation2 + $0x44] sm:$0xf]
    %v44 = vld [vmem:[#allocation2 + $0x48] sm:$0xf]
    %v45 = vld [vmem:[#allocation2 + $0x4c] sm:$0xf]
    %v46 = vld [vmem:[#allocation2 + $0x50] sm:$0x1]
    %v47 = vunpack.c.l.bf16 %v46
    %v48 = vld [vmem:[%s0] sm:$0x3]
    %v49 = vpack.c.bf16 %v48, %v48
    %v50 = vlaneseq
    %v51 = vshrl.u32 %v50, 7
    %v52 = vsub.s32 0, %v51
    %v53 = vrot.slane %v47, %v52
    %v58 = vunpack.c.l.b16 %v42
    %v59 = vunpack.c.l.b16 %v43
    %v60 = vunpack.c.l.b16 %v44
    %v61 = vunpack.c.l.b16 %v45
    %v62 = vpack.c.b16 %v59, %v58
    %v63 = vpack.c.b16 %v61, %v60
    %vm66 = vcmask 261120
    %v68 = vsel %vm66, %v49, 0
    %70 = vmatprep.subr.bf16.mxu0 0
    %71 = vmatpush1.bf16.msra.mxu0 %v62
    %72 = vmatprep.subr.bf16.mxu0 0
    %73 = vmatpush1.bf16.msra.mxu0 %v63
    %74 = vmatprep.subr.bf16.mxu0 0
    %75 = vmatpush1.bf16.msra.mxu0 0
    %76 = vmatprep.subr.bf16.mxu0 0
    %77 = vmatpush1.bf16.msra.mxu0 0
    %78 = vmatprep.subr.bf16.mxu0 0
    %79 = vmatpush1.bf16.msra.mxu0 0
    %80 = vmatprep.subr.bf16.mxu0 0
    %81 = vmatpush1.bf16.msra.mxu0 0
    %82 = vmatprep.subr.bf16.mxu0 0
    %83 = vmatpush1.bf16.msra.mxu0 0
    %84 = vmatprep.subr.bf16.mxu0 0
    %85 = vmatpush1.bf16.msra.mxu0 0
    %86 = vmatprep.subr.bf16.mxu0 0
    %87 = vmatpush1.bf16.msra.mxu0 0
    %88 = vmatprep.subr.bf16.mxu0 0
    %89 = vmatpush1.bf16.msra.mxu0 0
    %90 = vmatprep.subr.bf16.mxu0 0
    %91 = vmatpush1.bf16.msra.mxu0 0
    %92 = vmatprep.subr.bf16.mxu0 0
    %93 = vmatpush1.bf16.msra.mxu0 0
    %94 = vmatprep.subr.bf16.mxu0 0
    %95 = vmatpush1.bf16.msra.mxu0 0
    %96 = vmatprep.subr.bf16.mxu0 0
    %97 = vmatpush1.bf16.msra.mxu0 0
    %98 = vmatprep.subr.bf16.mxu0 0
    %99 = vmatpush1.bf16.msra.mxu0 0
    %100 = vmatprep.subr.bf16.mxu0 0
    %101 = vmatpush1.bf16.msra.mxu0 0
    %102 = vmatprep.mubr.bf16.mxu0 0
    %103 = vmatmul.mubr.bf16.gmra.mrb[0].mxu0 %v68
    %v104 = vpop.f32.mrb[0].mxu0
    %v105 = vadd.f32 %v53, %v104
    %v106 = vpop.f32.mrb[0].mxu0
    %v107 = vpop.f32.mrb[0].mxu0
    %v108 = vpop.f32.mrb[0].mxu0
    %109 = vdwg.mxu0
    %v110 = vxor.u32 %v105, 2147483648
    %v111 = vmul.f32 %v110, 1.442695
    %v112 = vpow.pop %v111
    %v113 = vadd.f32 %v112, 1.0
    %v114 = vrcp.pop %v113
    %v115 = vmul.f32 1.0, %v114
    %v116 = vpack.c.bf16 %v115, %v115
    %v133 = vunpack.c.l.b16 %v26
    %v134 = vunpack.c.l.b16 %v27
    %v135 = vunpack.c.l.b16 %v28
    %v136 = vunpack.c.l.b16 %v29
    %v137 = vunpack.c.l.b16 %v30
    %v138 = vunpack.c.l.b16 %v31
    %v139 = vunpack.c.l.b16 %v32
    %v140 = vunpack.c.l.b16 %v33
    %v141 = vunpack.c.l.b16 %v34
    %v142 = vunpack.c.l.b16 %v35
    %v143 = vunpack.c.l.b16 %v36
    %v144 = vunpack.c.l.b16 %v37
    %v145 = vunpack.c.l.b16 %v38
    %v146 = vunpack.c.l.b16 %v39
    %v147 = vunpack.c.l.b16 %v40
    %v148 = vunpack.c.l.b16 %v41
    %v149 = vpack.c.b16 %v134, %v133
    %v150 = vpack.c.b16 %v136, %v135
    %v151 = vpack.c.b16 %v138, %v137
    %v152 = vpack.c.b16 %v140, %v139
    %v153 = vpack.c.b16 %v142, %v141
    %v154 = vpack.c.b16 %v144, %v143
    %v155 = vpack.c.b16 %v146, %v145
    %v156 = vpack.c.b16 %v148, %v147
    %165 = vmatprep.subr.bf16.mxu0 0
    %166 = vmatpush1.bf16.msra.mxu0 %v149
    %167 = vmatprep.subr.bf16.mxu0 0
    %168 = vmatpush1.bf16.msra.mxu0 %v150
    %169 = vmatprep.subr.bf16.mxu0 0
    %170 = vmatpush1.bf16.msra.mxu0 %v151
    %171 = vmatprep.subr.bf16.mxu0 0
    %172 = vmatpush1.bf16.msra.mxu0 %v152
    %173 = vmatprep.subr.bf16.mxu0 0
    %174 = vmatpush1.bf16.msra.mxu0 %v153
    %175 = vmatprep.subr.bf16.mxu0 0
    %176 = vmatpush1.bf16.msra.mxu0 %v154
    %177 = vmatprep.subr.bf16.mxu0 0
    %178 = vmatpush1.bf16.msra.mxu0 %v155
    %179 = vmatprep.subr.bf16.mxu0 0
    %180 = vmatpush1.bf16.msra.mxu0 %v156
    %181 = vmatprep.subr.bf16.mxu0 0
    %182 = vmatpush1.bf16.msra.mxu0 0
    %183 = vmatprep.subr.bf16.mxu0 0
    %184 = vmatpush1.bf16.msra.mxu0 0
    %185 = vmatprep.subr.bf16.mxu0 0
    %186 = vmatpush1.bf16.msra.mxu0 0
    %187 = vmatprep.subr.bf16.mxu0 0
    %188 = vmatpush1.bf16.msra.mxu0 0
    %189 = vmatprep.subr.bf16.mxu0 0
    %190 = vmatpush1.bf16.msra.mxu0 0
    %191 = vmatprep.subr.bf16.mxu0 0
    %192 = vmatpush1.bf16.msra.mxu0 0
    %193 = vmatprep.subr.bf16.mxu0 0
    %194 = vmatpush1.bf16.msra.mxu0 0
    %195 = vmatprep.subr.bf16.mxu0 0
    %196 = vmatpush1.bf16.msra.mxu0 0
    %197 = vmatprep.mubr.bf16.mxu0 0
    %198 = vmatmul.mubr.bf16.gmra.mrb[0].mxu0 %v116
    %v199 = vpop.f32.mrb[0].mxu0
    %v200 = vadd.f32 0.0, %v199
    %v201 = vpop.f32.mrb[0].mxu0
    %v202 = vpop.f32.mrb[0].mxu0
    %v203 = vpop.f32.mrb[0].mxu0
    %204 = vdwg.mxu0
    %v205 = vmax.f32 %v200, 0.0
    %v206 = vmin.f32 %v205, 1.0
    %v207 = vmax.f32 %v115, %v206
    %v208 = vsub.f32 %v115, %v206
    %v209 = vand.u32 2147483647, %v208
    %v210 = vsub.f32 0.0, %v209
    %v211 = vmul.f32 %v210, 100.0
    %v212 = vmul.f32 %v211, 1.442695
    %v213 = vpow.pop %v212
    %v214 = vadd.f32 %v213, 1.0
    %v215 = vlog2.pop %v214
    %v216 = vmul.f32 %v215, 0.6931472
    %v217 = vmul.f32 -0.5, %v213
    %v218 = vadd.f32 %v217, 1.0
    %v219 = vmul.f32 %v218, %v213
    %v220 = vand.u32 2147483647, %v213
    %vm221 = vcmp.lt.f32.partialorder %v220, 0.0004427343
    %v222 = vsel %vm221, %v219, %v216
    %v223 = vmul.f32 %v222, 0.01
    %v224 = vadd.f32 %v207, %v223
    %v225 = vmax.f32 %v224, 0.0
    %v226 = vmin.f32 %v225, 1.0
    %v227 = vpack.c.bf16 %v226, %v226
    %228 = vmatprep.subr.bf16.mxu0 0
    %229 = vmatpush1.bf16.msra.mxu0 %v149
    %230 = vmatprep.subr.bf16.mxu0 0
    %231 = vmatpush1.bf16.msra.mxu0 %v150
    %232 = vmatprep.subr.bf16.mxu0 0
    %233 = vmatpush1.bf16.msra.mxu0 %v151
    %234 = vmatprep.subr.bf16.mxu0 0
    %235 = vmatpush1.bf16.msra.mxu0 %v152
    %236 = vmatprep.subr.bf16.mxu0 0
    %237 = vmatpush1.bf16.msra.mxu0 %v153
    %238 = vmatprep.subr.bf16.mxu0 0
    %239 = vmatpush1.bf16.msra.mxu0 %v154
    %240 = vmatprep.subr.bf16.mxu0 0
    %241 = vmatpush1.bf16.msra.mxu0 %v155
    %242 = vmatprep.subr.bf16.mxu0 0
    %243 = vmatpush1.bf16.msra.mxu0 %v156
    %244 = vmatprep.subr.bf16.mxu0 0
    %245 = vmatpush1.bf16.msra.mxu0 0
    %246 = vmatprep.subr.bf16.mxu0 0
    %247 = vmatpush1.bf16.msra.mxu0 0
    %248 = vmatprep.subr.bf16.mxu0 0
    %249 = vmatpush1.bf16.msra.mxu0 0
    %250 = vmatprep.subr.bf16.mxu0 0
    %251 = vmatpush1.bf16.msra.mxu0 0
    %252 = vmatprep.subr.bf16.mxu0 0
    %253 = vmatpush1.bf16.msra.mxu0 0
    %254 = vmatprep.subr.bf16.mxu0 0
    %255 = vmatpush1.bf16.msra.mxu0 0
    %256 = vmatprep.subr.bf16.mxu0 0
    %257 = vmatpush1.bf16.msra.mxu0 0
    %258 = vmatprep.subr.bf16.mxu0 0
    %259 = vmatpush1.bf16.msra.mxu0 0
    %260 = vmatprep.mubr.bf16.mxu0 0
    %261 = vmatmul.mubr.bf16.gmra.mrb[0].mxu0 %v227
    %v262 = vpop.f32.mrb[0].mxu0
    %v263 = vadd.f32 0.0, %v262
    %v264 = vpop.f32.mrb[0].mxu0
    %v265 = vpop.f32.mrb[0].mxu0
    %v266 = vpop.f32.mrb[0].mxu0
    %267 = vdwg.mxu0
    %v268 = vmax.f32 %v263, 0.0
    %v269 = vmin.f32 %v268, 1.0
    %v270 = vmax.f32 %v226, %v269
    %v271 = vsub.f32 %v226, %v269
    %v272 = vand.u32 2147483647, %v271
    %v273 = vsub.f32 0.0, %v272
    %v274 = vmul.f32 %v273, 100.0
    %v275 = vmul.f32 %v274, 1.442695
    %v276 = vpow.pop %v275
    %v277 = vadd.f32 %v276, 1.0
    %v278 = vlog2.pop %v277
    %v279 = vmul.f32 %v278, 0.6931472
    %v280 = vmul.f32 -0.5, %v276
    %v281 = vadd.f32 %v280, 1.0
    %v282 = vmul.f32 %v281, %v276
    %v283 = vand.u32 2147483647, %v276
    %vm284 = vcmp.lt.f32.partialorder %v283, 0.0004427343
    %v285 = vsel %vm284, %v282, %v279
    %v286 = vmul.f32 %v285, 0.01
    %v287 = vadd.f32 %v270, %v286
    %v288 = vmax.f32 %v287, 0.0
    %v289 = vmin.f32 %v288, 1.0
    %v290 = vpack.c.bf16 %v289, %v289
    %291 = vmatprep.subr.bf16.mxu0 0
    %292 = vmatpush1.bf16.msra.mxu0 %v149
    %293 = vmatprep.subr.bf16.mxu0 0
    %294 = vmatpush1.bf16.msra.mxu0 %v150
    %295 = vmatprep.subr.bf16.mxu0 0
    %296 = vmatpush1.bf16.msra.mxu0 %v151
    %297 = vmatprep.subr.bf16.mxu0 0
    %298 = vmatpush1.bf16.msra.mxu0 %v152
    %299 = vmatprep.subr.bf16.mxu0 0
    %300 = vmatpush1.bf16.msra.mxu0 %v153
    %301 = vmatprep.subr.bf16.mxu0 0
    %302 = vmatpush1.bf16.msra.mxu0 %v154
    %303 = vmatprep.subr.bf16.mxu0 0
    %304 = vmatpush1.bf16.msra.mxu0 %v155
    %305 = vmatprep.subr.bf16.mxu0 0
    %306 = vmatpush1.bf16.msra.mxu0 %v156
    %307 = vmatprep.subr.bf16.mxu0 0
    %308 = vmatpush1.bf16.msra.mxu0 0
    %309 = vmatprep.subr.bf16.mxu0 0
    %310 = vmatpush1.bf16.msra.mxu0 0
    %311 = vmatprep.subr.bf16.mxu0 0
    %312 = vmatpush1.bf16.msra.mxu0 0
    %313 = vmatprep.subr.bf16.mxu0 0
    %314 = vmatpush1.bf16.msra.mxu0 0
    %315 = vmatprep.subr.bf16.mxu0 0
    %316 = vmatpush1.bf16.msra.mxu0 0
    %317 = vmatprep.subr.bf16.mxu0 0
    %318 = vmatpush1.bf16.msra.mxu0 0
    %319 = vmatprep.subr.bf16.mxu0 0
    %320 = vmatpush1.bf16.msra.mxu0 0
    %321 = vmatprep.subr.bf16.mxu0 0
    %322 = vmatpush1.bf16.msra.mxu0 0
    %323 = vmatprep.mubr.bf16.mxu0 0
    %324 = vmatmul.mubr.bf16.gmra.mrb[0].mxu0 %v290
    %v325 = vpop.f32.mrb[0].mxu0
    %v326 = vadd.f32 0.0, %v325
    %v327 = vpop.f32.mrb[0].mxu0
    %v328 = vpop.f32.mrb[0].mxu0
    %v329 = vpop.f32.mrb[0].mxu0
    %330 = vdwg.mxu0
    %v331 = vmax.f32 %v326, 0.0
    %v332 = vmin.f32 %v331, 1.0
    %v333 = vmax.f32 %v289, %v332
    %v334 = vsub.f32 %v289, %v332
    %v335 = vand.u32 2147483647, %v334
    %v336 = vsub.f32 0.0, %v335
    %v337 = vmul.f32 %v336, 100.0
    %v338 = vmul.f32 %v337, 1.442695
    %v339 = vpow.pop %v338
    %v340 = vadd.f32 %v339, 1.0
    %v341 = vlog2.pop %v340
    %v342 = vmul.f32 %v341, 0.6931472
    %v343 = vmul.f32 -0.5, %v339
    %v344 = vadd.f32 %v343, 1.0
    %v345 = vmul.f32 %v344, %v339
    %v346 = vand.u32 2147483647, %v339
    %vm347 = vcmp.lt.f32.partialorder %v346, 0.0004427343
    %v348 = vsel %vm347, %v345, %v342
    %v349 = vmul.f32 %v348, 0.01
    %v350 = vadd.f32 %v333, %v349
    %v351 = vmax.f32 %v350, 0.0
    %v352 = vmin.f32 %v351, 1.0
    %v353 = vpack.c.bf16 %v352, %v352
    %354 = vmatprep.subr.bf16.mxu0 0
    %355 = vmatpush1.bf16.msra.mxu0 %v149
    %356 = vmatprep.subr.bf16.mxu0 0
    %357 = vmatpush1.bf16.msra.mxu0 %v150
    %358 = vmatprep.subr.bf16.mxu0 0
    %359 = vmatpush1.bf16.msra.mxu0 %v151
    %360 = vmatprep.subr.bf16.mxu0 0
    %361 = vmatpush1.bf16.msra.mxu0 %v152
    %362 = vmatprep.subr.bf16.mxu0 0
    %363 = vmatpush1.bf16.msra.mxu0 %v153
    %364 = vmatprep.subr.bf16.mxu0 0
    %365 = vmatpush1.bf16.msra.mxu0 %v154
    %366 = vmatprep.subr.bf16.mxu0 0
    %367 = vmatpush1.bf16.msra.mxu0 %v155
    %368 = vmatprep.subr.bf16.mxu0 0
    %369 = vmatpush1.bf16.msra.mxu0 %v156
    %370 = vmatprep.subr.bf16.mxu0 0
    %371 = vmatpush1.bf16.msra.mxu0 0
    %372 = vmatprep.subr.bf16.mxu0 0
    %373 = vmatpush1.bf16.msra.mxu0 0
    %374 = vmatprep.subr.bf16.mxu0 0
    %375 = vmatpush1.bf16.msra.mxu0 0
    %376 = vmatprep.subr.bf16.mxu0 0
    %377 = vmatpush1.bf16.msra.mxu0 0
    %378 = vmatprep.subr.bf16.mxu0 0
    %379 = vmatpush1.bf16.msra.mxu0 0
    %380 = vmatprep.subr.bf16.mxu0 0
    %381 = vmatpush1.bf16.msra.mxu0 0
    %382 = vmatprep.subr.bf16.mxu0 0
    %383 = vmatpush1.bf16.msra.mxu0 0
    %384 = vmatprep.subr.bf16.mxu0 0
    %385 = vmatpush1.bf16.msra.mxu0 0
    %386 = vmatprep.mubr.bf16.mxu0 0
    %387 = vmatmul.mubr.bf16.gmra.mrb[0].mxu0 %v353
    %v388 = vpop.f32.mrb[0].mxu0
    %v389 = vadd.f32 0.0, %v388
    %v390 = vpop.f32.mrb[0].mxu0
    %v391 = vpop.f32.mrb[0].mxu0
    %v392 = vpop.f32.mrb[0].mxu0
    %393 = vdwg.mxu0
    %v394 = vmax.f32 %v389, 0.0
    %v395 = vmin.f32 %v394, 1.0
    %v396 = vmax.f32 %v352, %v395
    %v397 = vsub.f32 %v352, %v395
    %v398 = vand.u32 2147483647, %v397
    %v399 = vsub.f32 0.0, %v398
    %v400 = vmul.f32 %v399, 100.0
    %v401 = vmul.f32 %v400, 1.442695
    %v402 = vpow.pop %v401
    %v403 = vadd.f32 %v402, 1.0
    %v404 = vlog2.pop %v403
    %v405 = vmul.f32 %v404, 0.6931472
    %v406 = vmul.f32 -0.5, %v402
    %v407 = vadd.f32 %v406, 1.0
    %v408 = vmul.f32 %v407, %v402
    %v409 = vand.u32 2147483647, %v402
    %vm410 = vcmp.lt.f32.partialorder %v409, 0.0004427343
    %v411 = vsel %vm410, %v408, %v405
    %v412 = vmul.f32 %v411, 0.01
    %v413 = vadd.f32 %v396, %v412
    %v414 = vmax.f32 %v413, 0.0
    %v415 = vmin.f32 %v414, 1.0
    %416 = vst [vmem:[%s2] sm:$0x3] %v415
    // Predicated region
    $region14: #{nsfr_forward.1} parent=1 // pred_check
      _
    $region15: #{nsfr_forward.1} parent=1 // pred_check_branch
      %418 = sbr.rel (0) target = $region17
    $region16: #{nsfr_forward.1} parent=1 // pred_region
      _
    $region17: #{nsfr_forward.1} parent=1 // pred_fallthru
      _
    // Predicated region
    $region18: #{nsfr_forward.1} parent=1 // pred_check
      _
    $region19: #{nsfr_forward.1} parent=1 // pred_check_branch
      %420 = sbr.rel (0) target = $region21
    $region20: #{nsfr_forward.1} parent=1 // pred_region
      _
    $region21: #{nsfr_forward.1} parent=1 // pred_fallthru
      _
    %421 = vsyncpa [#allocation3], 1

</llo_original>
